<compile_context>
chip_gen: v7x
topology: tpu7x:2x2x1
jax: 0.10.0
libtpu: 0.0.40
codegen_flags: <defaults>
</compile_context>

<pallas_src>
import jax
import jax.numpy as jnp
from jax.experimental import pallas as pl
from jax.experimental.pallas import tpu as pltpu


# ---------------------------------------------------------------------------
# Kernel
# ---------------------------------------------------------------------------
def mlp_kernel(x_ref,
               w1_ref, b1_ref,
               w2_ref, b2_ref,
               w3_ref, b3_ref,
               w4_ref, b4_ref,
               o_ref):
    # layer_1 (+ folded BN1) + relu
    h = jnp.dot(x_ref[...], w1_ref[...],
                preferred_element_type=jnp.float32) + b1_ref[...]
    h = jnp.maximum(h, 0.0).astype(jnp.bfloat16)

    # layer_2 (+ folded BN2) + relu (+ dropout == identity in eval)
    h = jnp.dot(h, w2_ref[...],
                preferred_element_type=jnp.float32) + b2_ref[...]
    h = jnp.maximum(h, 0.0).astype(jnp.bfloat16)

    # layer_3 (+ folded BN3, padded 64->128) + relu (+ dropout == identity)
    h = jnp.dot(h, w3_ref[...],
                preferred_element_type=jnp.float32) + b3_ref[...]
    h = jnp.maximum(h, 0.0).astype(jnp.bfloat16)

    # layer_out (padded C -> Cp), f32 result, lane-dense store
    o_ref[...] = jnp.dot(h, w4_ref[...],
                         preferred_element_type=jnp.float32) + b4_ref[...]


# ---------------------------------------------------------------------------
# Parameter folding / padding / casting (wrapper-side, exact)
# ---------------------------------------------------------------------------
def _round_up(n, m):
    return ((n + m - 1) // m) * m


def _fold_bn(w, b, gamma, beta, mean, var, eps):
    """Fold eval-mode BatchNorm1d into the preceding Linear (exact)."""
    scale = gamma / jnp.sqrt(var + eps)          # (out,)
    shift = beta - mean * scale                  # (out,)
    return w * scale[None, :], b * scale + shift


def _pack_params(p, eps=1e-5):
    """Fold BN, pad narrow dims to 128, cast matmul operands to bf16."""
    w1, b1 = _fold_bn(p["w1"], p["b1"], p["g1"], p["be1"], p["m1"], p["v1"], eps)
    w2, b2 = _fold_bn(p["w2"], p["b2"], p["g2"], p["be2"], p["m2"], p["v2"], eps)
    w3, b3 = _fold_bn(p["w3"], p["b3"], p["g3"], p["be3"], p["m3"], p["v3"], eps)
    w4, b4 = p["w4"], p["b4"]

    # Pad hidden 64 -> 128 (zero columns in w3/b3, zero rows in w4): exact.
    h3, h3p = w3.shape[1], _round_up(w3.shape[1], 128)
    w3 = jnp.pad(w3, ((0, 0), (0, h3p - h3)))
    b3 = jnp.pad(b3, ((0, h3p - h3),))
    w4 = jnp.pad(w4, ((0, h3p - h3), (0, 0)))

    # Pad class dim C -> multiple of 128 so the output store is lane-dense.
    c, cp = w4.shape[1], _round_up(w4.shape[1], 128)
    w4 = jnp.pad(w4, ((0, 0), (0, cp - c)))
    b4 = jnp.pad(b4, ((0, cp - c),))

    def wcast(w):
        return w.astype(jnp.bfloat16)

    def brow(b):
        return b.reshape(1, -1).astype(jnp.float32)

    return {
        "w1": wcast(w1), "b1": brow(b1),
        "w2": wcast(w2), "b2": brow(b2),
        "w3": wcast(w3), "b3": brow(b3),
        "w4": wcast(w4), "b4": brow(b4),
    }


# ---------------------------------------------------------------------------
# Forward wrapper
# ---------------------------------------------------------------------------
def multiclass_classification_forward(x, params, *, batch_tile=512, eps=1e-5):
    B, F = x.shape
    C = params["w4"].shape[1]

    packed = _pack_params(params, eps)
    Cp = packed["w4"].shape[1]
    H2p = packed["w3"].shape[0]   # 128
    H3p = packed["w3"].shape[1]   # 128 (padded from 64)

    # Batch tile: multiple of 16 (bf16 sublane packing), capped by the batch.
    tb = min(batch_tile, _round_up(B, 16))
    tb = _round_up(max(tb, 16), 16)
    B_pad = _round_up(B, tb)

    x_bf16 = x.astype(jnp.bfloat16)
    if B_pad != B:
        x_bf16 = jnp.pad(x_bf16, ((0, B_pad - B), (0, 0)))

    def rep_spec(arr):
        nd = arr.ndim
        return pl.BlockSpec(arr.shape, lambda i, _nd=nd: (0,) * _nd)

    in_specs = [pl.BlockSpec((tb, F), lambda i: (i, 0))]
    param_order = ("w1", "b1", "w2", "b2", "w3", "b3", "w4", "b4")
    in_specs += [rep_spec(packed[k]) for k in param_order]

    flops = 2 * B_pad * (F * 512 + 512 * H2p + H2p * H3p + H3p * Cp)
    bytes_accessed = int(
        x_bf16.size * 2 + B_pad * Cp * 4
        + sum(int(packed[k].size) * packed[k].dtype.itemsize for k in param_order))

    out = pl.pallas_call(
        mlp_kernel,
        out_shape=jax.ShapeDtypeStruct((B_pad, Cp), jnp.float32),
        grid_spec=pltpu.PrefetchScalarGridSpec(
            num_scalar_prefetch=0,
            grid=(B_pad // tb,),
            in_specs=in_specs,
            out_specs=pl.BlockSpec((tb, Cp), lambda i: (i, 0)),
        ),
        compiler_params=pltpu.CompilerParams(
            dimension_semantics=("parallel",)),
        cost_estimate=pl.CostEstimate(
            flops=flops, transcendentals=0, bytes_accessed=bytes_accessed),
    )(x_bf16, *[packed[k] for k in param_order])

    return out[:B, :C]


# ---------------------------------------------------------------------------
# Parameter init mirroring the PyTorch module (weights stored (in, out))
# ---------------------------------------------------------------------------
def init_params(key, num_feature, num_class):
    dims = [(num_feature, 512), (512, 128), (128, 64), (64, num_class)]
    params = {}
    for idx, (fan_in, fan_out) in enumerate(dims, start=1):
        key, kw, kb = jax.random.split(key, 3)
        bound = 1.0 / jnp.sqrt(fan_in)
        params[f"w{idx}"] = jax.random.uniform(
            kw, (fan_in, fan_out), jnp.float32, -bound, bound)
        params[f"b{idx}"] = jax.random.uniform(
            kb, (fan_out,), jnp.float32, -bound, bound)
    # Non-trivial BN running stats / affine so the fold is actually exercised.
    for idx, dim in zip((1, 2, 3), (512, 128, 64)):
        key, k1, k2, k3, k4 = jax.random.split(key, 5)
        params[f"g{idx}"] = jax.random.uniform(k1, (dim,), jnp.float32, 0.5, 1.5)
        params[f"be{idx}"] = 0.1 * jax.random.normal(k2, (dim,), jnp.float32)
        params[f"m{idx}"] = 0.1 * jax.random.normal(k3, (dim,), jnp.float32)
        params[f"v{idx}"] = jax.random.uniform(k4, (dim,), jnp.float32, 0.5, 1.5)
    return params


# ---------------------------------------------------------------------------
# Pure-JAX f32 reference (un-folded, un-padded) for correctness checking
# ---------------------------------------------------------------------------
def reference_forward(x, p, eps=1e-5):
    def bn(h, g, be, m, v):
        return (h - m) / jnp.sqrt(v + eps) * g + be

    h = jnp.maximum(bn(x @ p["w1"] + p["b1"], p["g1"], p["be1"], p["m1"], p["v1"]), 0.0)
    h = jnp.maximum(bn(h @ p["w2"] + p["b2"], p["g2"], p["be2"], p["m2"], p["v2"]), 0.0)
    h = jnp.maximum(bn(h @ p["w3"] + p["b3"], p["g3"], p["be3"], p["m3"], p["v3"]), 0.0)
    return h @ p["w4"] + p["b4"]


if __name__ == "__main__":
    num_feature, num_class, batch = 32, 8, 16
    key = jax.random.PRNGKey(0)
    key, kx = jax.random.split(key)
    x = jax.random.normal(kx, (batch, num_feature), jnp.float32)
    params = init_params(key, num_feature, num_class)

    out = multiclass_classification_forward(x, params)
    out = jax.block_until_ready(out)

    ref = reference_forward(x, params)
    assert out.shape == (batch, num_class)
    # bf16 matmul operands (f32 accumulation) vs pure-f32 reference.
    assert jnp.allclose(out, ref, atol=5e-2, rtol=5e-2), (
        float(jnp.max(jnp.abs(out - ref))))
    print("KERNEL_OK")
</pallas_src>

<mosaic_0001>
module attributes {stable_mosaic.version = 11 : i64} {
  func.func @mlp_kernel(%arg0: i32, %arg1: memref<16x32xbf16, #tpu.memory_space<vmem>>, %arg2: memref<32x512xbf16, #tpu.memory_space<vmem>>, %arg3: memref<1x512xf32, #tpu.memory_space<vmem>>, %arg4: memref<512x128xbf16, #tpu.memory_space<vmem>>, %arg5: memref<1x128xf32, #tpu.memory_space<vmem>>, %arg6: memref<128x128xbf16, #tpu.memory_space<vmem>>, %arg7: memref<1x128xf32, #tpu.memory_space<vmem>>, %arg8: memref<128x128xbf16, #tpu.memory_space<vmem>>, %arg9: memref<1x128xf32, #tpu.memory_space<vmem>>, %arg10: memref<16x128xf32, #tpu.memory_space<vmem>>) attributes {dimension_semantics = [#tpu.dimension_semantics<parallel>], iteration_bounds = array<i64: 1>, scalar_prefetch = 0 : i64, scratch_operands = 0 : i64, tpu.core_type = #tpu.core_type<tc>, window_params = [{transform_indices = @transform_0, window_bounds = array<i64: 16, 32>}, {pipeline_mode = #tpu.pipeline_mode<synchronous>, transform_indices = @transform_1, window_bounds = array<i64: 32, 512>}, {pipeline_mode = #tpu.pipeline_mode<synchronous>, transform_indices = @transform_2, window_bounds = array<i64: 1, 512>}, {pipeline_mode = #tpu.pipeline_mode<synchronous>, transform_indices = @transform_3, window_bounds = array<i64: 512, 128>}, {pipeline_mode = #tpu.pipeline_mode<synchronous>, transform_indices = @transform_4, window_bounds = array<i64: 1, 128>}, {pipeline_mode = #tpu.pipeline_mode<synchronous>, transform_indices = @transform_5, window_bounds = array<i64: 128, 128>}, {pipeline_mode = #tpu.pipeline_mode<synchronous>, transform_indices = @transform_6, window_bounds = array<i64: 1, 128>}, {pipeline_mode = #tpu.pipeline_mode<synchronous>, transform_indices = @transform_7, window_bounds = array<i64: 128, 128>}, {pipeline_mode = #tpu.pipeline_mode<synchronous>, transform_indices = @transform_8, window_bounds = array<i64: 1, 128>}, {transform_indices = @transform_9, window_bounds = array<i64: 16, 128>}]} {
    %c0 = arith.constant 0 : index
    %c0_0 = arith.constant 0 : index
    %0 = vector.load %arg1[%c0, %c0_0] : memref<16x32xbf16, #tpu.memory_space<vmem>>, vector<16x32xbf16>
    %c0_1 = arith.constant 0 : index
    %c0_2 = arith.constant 0 : index
    %1 = vector.load %arg2[%c0_1, %c0_2] : memref<32x512xbf16, #tpu.memory_space<vmem>>, vector<32x512xbf16>
    %cst = arith.constant dense<0.000000e+00> : vector<16x512xf32>
    %2 = tpu.matmul %0, %1, %cst {dimension_numbers = #tpu.dot_dimension_numbers<[1], [0], [0], [1], [0, 0, 1, 1], [], []>} : vector<16x32xbf16>, vector<32x512xbf16>, vector<16x512xf32> -> vector<16x512xf32>
    %c0_3 = arith.constant 0 : index
    %c0_4 = arith.constant 0 : index
    %3 = vector.load %arg3[%c0_3, %c0_4] : memref<1x512xf32, #tpu.memory_space<vmem>>, vector<1x512xf32>
    %4 = vector.broadcast %3 : vector<1x512xf32> to vector<16x512xf32>
    %5 = arith.addf %2, %4 : vector<16x512xf32>
    %cst_5 = arith.constant 0.000000e+00 : f32
    %6 = vector.broadcast %cst_5 : f32 to vector<16x512xf32>
    %7 = arith.maximumf %5, %6 : vector<16x512xf32>
    %8 = arith.truncf %7 : vector<16x512xf32> to vector<16x512xbf16>
    %c0_6 = arith.constant 0 : index
    %c0_7 = arith.constant 0 : index
    %9 = vector.load %arg4[%c0_6, %c0_7] : memref<512x128xbf16, #tpu.memory_space<vmem>>, vector<512x128xbf16>
    %cst_8 = arith.constant dense<0.000000e+00> : vector<16x128xf32>
    %10 = tpu.matmul %8, %9, %cst_8 {dimension_numbers = #tpu.dot_dimension_numbers<[1], [0], [0], [1], [0, 0, 1, 1], [], []>} : vector<16x512xbf16>, vector<512x128xbf16>, vector<16x128xf32> -> vector<16x128xf32>
    %c0_9 = arith.constant 0 : index
    %c0_10 = arith.constant 0 : index
    %11 = vector.load %arg5[%c0_9, %c0_10] : memref<1x128xf32, #tpu.memory_space<vmem>>, vector<1x128xf32>
    %12 = vector.broadcast %11 : vector<1x128xf32> to vector<16x128xf32>
    %13 = arith.addf %10, %12 : vector<16x128xf32>
    %cst_11 = arith.constant 0.000000e+00 : f32
    %14 = vector.broadcast %cst_11 : f32 to vector<16x128xf32>
    %15 = arith.maximumf %13, %14 : vector<16x128xf32>
    %16 = arith.truncf %15 : vector<16x128xf32> to vector<16x128xbf16>
    %c0_12 = arith.constant 0 : index
    %c0_13 = arith.constant 0 : index
    %17 = vector.load %arg6[%c0_12, %c0_13] : memref<128x128xbf16, #tpu.memory_space<vmem>>, vector<128x128xbf16>
    %cst_14 = arith.constant dense<0.000000e+00> : vector<16x128xf32>
    %18 = tpu.matmul %16, %17, %cst_14 {dimension_numbers = #tpu.dot_dimension_numbers<[1], [0], [0], [1], [0, 0, 1, 1], [], []>} : vector<16x128xbf16>, vector<128x128xbf16>, vector<16x128xf32> -> vector<16x128xf32>
    %c0_15 = arith.constant 0 : index
    %c0_16 = arith.constant 0 : index
    %19 = vector.load %arg7[%c0_15, %c0_16] : memref<1x128xf32, #tpu.memory_space<vmem>>, vector<1x128xf32>
    %20 = vector.broadcast %19 : vector<1x128xf32> to vector<16x128xf32>
    %21 = arith.addf %18, %20 : vector<16x128xf32>
    %cst_17 = arith.constant 0.000000e+00 : f32
    %22 = vector.broadcast %cst_17 : f32 to vector<16x128xf32>
    %23 = arith.maximumf %21, %22 : vector<16x128xf32>
    %24 = arith.truncf %23 : vector<16x128xf32> to vector<16x128xbf16>
    %c0_18 = arith.constant 0 : index
    %c0_19 = arith.constant 0 : index
    %25 = vector.load %arg8[%c0_18, %c0_19] : memref<128x128xbf16, #tpu.memory_space<vmem>>, vector<128x128xbf16>
    %cst_20 = arith.constant dense<0.000000e+00> : vector<16x128xf32>
    %26 = tpu.matmul %24, %25, %cst_20 {dimension_numbers = #tpu.dot_dimension_numbers<[1], [0], [0], [1], [0, 0, 1, 1], [], []>} : vector<16x128xbf16>, vector<128x128xbf16>, vector<16x128xf32> -> vector<16x128xf32>
    %c0_21 = arith.constant 0 : index
    %c0_22 = arith.constant 0 : index
    %27 = vector.load %arg9[%c0_21, %c0_22] : memref<1x128xf32, #tpu.memory_space<vmem>>, vector<1x128xf32>
    %28 = vector.broadcast %27 : vector<1x128xf32> to vector<16x128xf32>
    %29 = arith.addf %26, %28 : vector<16x128xf32>
    %c0_23 = arith.constant 0 : index
    %c0_24 = arith.constant 0 : index
    %30 = vector.load %arg10[%c0_23, %c0_24] : memref<16x128xf32, #tpu.memory_space<vmem>>, vector<16x128xf32>
    tpu.vector_store %arg10[%c0_23, %c0_24], %29 {strides = array<i32>} : memref<16x128xf32, #tpu.memory_space<vmem>>, vector<16x128xf32>,
    return
  }
  func.func @transform_0(%arg0: i32) -> (i32, i32) {
    %c0_i32 = arith.constant 0 : i32
    %c0_i32_0 = arith.constant 0 : i32
    return %arg0, %c0_i32 : i32, i32
  }
  func.func @transform_1(%arg0: i32) -> (i32, i32) {
    %c0_i32 = arith.constant 0 : i32
    %c0_i32_0 = arith.constant 0 : i32
    %c0_i32_1 = arith.constant 0 : i32
    return %c0_i32, %c0_i32_0 : i32, i32
  }
  func.func @transform_2(%arg0: i32) -> (i32, i32) {
    %c0_i32 = arith.constant 0 : i32
    %c0_i32_0 = arith.constant 0 : i32
    %c0_i32_1 = arith.constant 0 : i32
    return %c0_i32, %c0_i32_0 : i32, i32
  }
  func.func @transform_3(%arg0: i32) -> (i32, i32) {
    %c0_i32 = arith.constant 0 : i32
    %c0_i32_0 = arith.constant 0 : i32
    %c0_i32_1 = arith.constant 0 : i32
    return %c0_i32, %c0_i32_0 : i32, i32
  }
  func.func @transform_4(%arg0: i32) -> (i32, i32) {
    %c0_i32 = arith.constant 0 : i32
    %c0_i32_0 = arith.constant 0 : i32
    %c0_i32_1 = arith.constant 0 : i32
    return %c0_i32, %c0_i32_0 : i32, i32
  }
  func.func @transform_5(%arg0: i32) -> (i32, i32) {
    %c0_i32 = arith.constant 0 : i32
    %c0_i32_0 = arith.constant 0 : i32
    %c0_i32_1 = arith.constant 0 : i32
    return %c0_i32, %c0_i32_0 : i32, i32
  }
  func.func @transform_6(%arg0: i32) -> (i32, i32) {
    %c0_i32 = arith.constant 0 : i32
    %c0_i32_0 = arith.constant 0 : i32
    %c0_i32_1 = arith.constant 0 : i32
    return %c0_i32, %c0_i32_0 : i32, i32
  }
  func.func @transform_7(%arg0: i32) -> (i32, i32) {
    %c0_i32 = arith.constant 0 : i32
    %c0_i32_0 = arith.constant 0 : i32
    %c0_i32_1 = arith.constant 0 : i32
    return %c0_i32, %c0_i32_0 : i32, i32
  }
  func.func @transform_8(%arg0: i32) -> (i32, i32) {
    %c0_i32 = arith.constant 0 : i32
    %c0_i32_0 = arith.constant 0 : i32
    %c0_i32_1 = arith.constant 0 : i32
    return %c0_i32, %c0_i32_0 : i32, i32
  }
  func.func @transform_9(%arg0: i32) -> (i32, i32) {
    %c0_i32 = arith.constant 0 : i32
    %c0_i32_0 = arith.constant 0 : i32
    return %arg0, %c0_i32 : i32, i32
  }
}

</mosaic_0001>

<llo_original>
// kernel: tpu_custom_call.1
$region0: #{tpu_custom_call.1}
  #allocation0 [shape = 'u32[]', space=smem, size = 0x4, offset = 0x4, fixed_abs, tag = 'smem constant byte address 0x4 - core index']
  #allocation1 [shape = 'u32[144,128]{1,0:T(1,128)}', space=vmem, size = 0x12000, scoped, tag = 'internal scratch']
  %s0 = inlined_call_operand.hbm [shape: bf16[16,32], index: 0, kind: input, shape index: {}]
  %s1 = inlined_call_operand.hbm [shape: bf16[32,512], index: 1, kind: input, shape index: {}]
  %s2 = inlined_call_operand.vmem [shape: f32[1,512], index: 2, kind: input, shape index: {}]
  %s3 = inlined_call_operand.hbm [shape: bf16[512,128], index: 3, kind: input, shape index: {}]
  %s4 = inlined_call_operand.vmem [shape: f32[1,128], index: 4, kind: input, shape index: {}]
  %s5 = inlined_call_operand.hbm [shape: bf16[128,128], index: 5, kind: input, shape index: {}]
  %s6 = inlined_call_operand.vmem [shape: f32[1,128], index: 6, kind: input, shape index: {}]
  %s7 = inlined_call_operand.hbm [shape: bf16[128,128], index: 7, kind: input, shape index: {}]
  %s8 = inlined_call_operand.vmem [shape: f32[1,128], index: 8, kind: input, shape index: {}]
  %s9 = inlined_call_operand.hbm [shape: f32[16,128], index: 9, kind: output, shape index: {}]
  %s10 = sld [smem:[#allocation0]]
  $region66: #{tpu_custom_call.1} parent=0
    _
  %s12 = ssub.s32 1, %s10
  %s13 = scalar_select 0, %s12, %s10
  $region1: #{tpu_custom_call.1} parent=0
    #allocation2 [shape = 'u8[4096]{0}', space=vmem, size = 0x1000, scoped, tag = 'input window, operand 0, single buffered']
    #allocation3 [shape = 's32[1]{0}', space=sflag, size = 0x4, scoped, tag = 'scoped memory for tpu_custom_call.1']
    #allocation4 [shape = 's32[1]{0}', space=sflag, size = 0x4, scoped, tag = 'scoped memory for tpu_custom_call.1']
    #allocation5 [shape = 'u8[32768]{0}', space=vmem, size = 0x8000, scoped, tag = 'input window, operand 1, single buffered']
    #allocation6 [shape = 's32[1]{0}', space=sflag, size = 0x4, scoped, tag = 'scoped memory for tpu_custom_call.1']
    #allocation7 [shape = 'u8[131072]{0}', space=vmem, size = 0x20000, scoped, tag = 'input window, operand 3, single buffered']
    #allocation8 [shape = 'u8[32768]{0}', space=vmem, size = 0x8000, scoped, tag = 'input window, operand 5, single buffered']
    #allocation9 [shape = 's32[1]{0}', space=sflag, size = 0x4, scoped, tag = 'scoped memory for tpu_custom_call.1']
    #allocation10 [shape = 'u8[32768]{0}', space=vmem, size = 0x8000, scoped, tag = 'input window, operand 7, single buffered']
    #allocation11 [shape = 'u8[8192]{0}', space=vmem, size = 0x2000, scoped, tag = 'output window, operand 0, single buffered']
    %14 = vsyncpa [#allocation3], 0
    %15 = vsyncpa [#allocation6], 0
    %16 = vsyncpa [#allocation9], 0
    %17 = vsyncpa [#allocation4], 0
    // Predicated region
    $region2: #{tpu_custom_call.1} parent=1 // pred_check
      _
    $region3: #{tpu_custom_call.1} parent=1 // pred_check_branch
      %19 = sbr.rel (0) target = $region5
    $region4: #{tpu_custom_call.1} parent=1 // pred_region
      %s21 = ssub.s32 128, 128
      %22 = vsyncadd [#allocation3], %s21
      %s23 = sshll.u32 [#allocation2], 4
      %s24 = int_to_ptr.vmem [resolvable:$true] %s23
      %29 = dma.hbm_to_vmem [thread:$0]  %s0, 128, %s24, [#allocation3], 64, 64, 4
    $region5: #{tpu_custom_call.1} parent=1 // pred_fallthru
      _
    // Predicated region
    $region6: #{tpu_custom_call.1} parent=1 // pred_check
      _
    $region7: #{tpu_custom_call.1} parent=1 // pred_check_branch
      %31 = sbr.rel (0) target = $region9
    $region8: #{tpu_custom_call.1} parent=1 // pred_region
      %s33 = ssub.s32 1024, 1024
      %34 = vsyncadd [#allocation6], %s33
      %s35 = sshll.u32 [#allocation5], 4
      %s36 = int_to_ptr.vmem [resolvable:$true] %s35
      %41 = dma.hbm_to_vmem [thread:$0]  %s1, 1024, %s36, [#allocation6], 256, 256, 16
    $region9: #{tpu_custom_call.1} parent=1 // pred_fallthru
      _
    // Predicated region
    $region10: #{tpu_custom_call.1} parent=1 // pred_check
      _
    $region11: #{tpu_custom_call.1} parent=1 // pred_check_branch
      %43 = sbr.rel (0) target = $region13
    $region12: #{tpu_custom_call.1} parent=1 // pred_region
      _
    $region13: #{tpu_custom_call.1} parent=1 // pred_fallthru
      _
    // Predicated region
    $region14: #{tpu_custom_call.1} parent=1 // pred_check
      _
    $region15: #{tpu_custom_call.1} parent=1 // pred_check_branch
      %45 = sbr.rel (0) target = $region17
    $region16: #{tpu_custom_call.1} parent=1 // pred_region
      %s47 = ssub.s32 4096, 4096
      %48 = vsyncadd [#allocation6], %s47
      %s49 = sshll.u32 [#allocation7], 4
      %s50 = int_to_ptr.vmem [resolvable:$true] %s49
      %55 = dma.hbm_to_vmem [thread:$0]  %s3, 4096, %s50, [#allocation6], 64, 64, 4
    $region17: #{tpu_custom_call.1} parent=1 // pred_fallthru
      _
    // Predicated region
    $region18: #{tpu_custom_call.1} parent=1 // pred_check
      _
    $region19: #{tpu_custom_call.1} parent=1 // pred_check_branch
      %57 = sbr.rel (0) target = $region21
    $region20: #{tpu_custom_call.1} parent=1 // pred_region
      _
    $region21: #{tpu_custom_call.1} parent=1 // pred_fallthru
      _
    // Predicated region
    $region22: #{tpu_custom_call.1} parent=1 // pred_check
      _
    $region23: #{tpu_custom_call.1} parent=1 // pred_check_branch
      %59 = sbr.rel (0) target = $region25
    $region24: #{tpu_custom_call.1} parent=1 // pred_region
      %s61 = ssub.s32 1024, 1024
      %62 = vsyncadd [#allocation9], %s61
      %s63 = sshll.u32 [#allocation8], 4
      %s64 = int_to_ptr.vmem [resolvable:$true] %s63
      %69 = dma.hbm_to_vmem [thread:$0]  %s5, 1024, %s64, [#allocation9], 64, 64, 4
    $region25: #{tpu_custom_call.1} parent=1 // pred_fallthru
      _
    // Predicated region
    $region26: #{tpu_custom_call.1} parent=1 // pred_check
      _
    $region27: #{tpu_custom_call.1} parent=1 // pred_check_branch
      %71 = sbr.rel (0) target = $region29
    $region28: #{tpu_custom_call.1} parent=1 // pred_region
      _
    $region29: #{tpu_custom_call.1} parent=1 // pred_fallthru
      _
    // Predicated region
    $region30: #{tpu_custom_call.1} parent=1 // pred_check
      _
    $region31: #{tpu_custom_call.1} parent=1 // pred_check_branch
      %73 = sbr.rel (0) target = $region33
    $region32: #{tpu_custom_call.1} parent=1 // pred_region
      %s75 = ssub.s32 1024, 1024
      %76 = vsyncadd [#allocation9], %s75
      %s77 = sshll.u32 [#allocation10], 4
      %s78 = int_to_ptr.vmem [resolvable:$true] %s77
      %83 = dma.hbm_to_vmem [thread:$0]  %s7, 1024, %s78, [#allocation9], 64, 64, 4
    $region33: #{tpu_custom_call.1} parent=1 // pred_fallthru
      _
    // Predicated region
    $region34: #{tpu_custom_call.1} parent=1 // pred_check
      _
    $region35: #{tpu_custom_call.1} parent=1 // pred_check_branch
      %85 = sbr.rel (0) target = $region37
    $region36: #{tpu_custom_call.1} parent=1 // pred_region
      _
    $region37: #{tpu_custom_call.1} parent=1 // pred_fallthru
      _
    // Predicated region
    $region38: #{tpu_custom_call.1} parent=1 // pred_check
      _
    $region39: #{tpu_custom_call.1} parent=1 // pred_check_branch
      %87 = sbr.rel (0) target = $region41
    $region40: #{tpu_custom_call.1} parent=1 // pred_region
      %88 = dma.done [#allocation3], 128
    $region41: #{tpu_custom_call.1} parent=1 // pred_fallthru
      _
    // Predicated region
    $region42: #{tpu_custom_call.1} parent=1 // pred_check
      _
    $region43: #{tpu_custom_call.1} parent=1 // pred_check_branch
      %90 = sbr.rel (0) target = $region45
    $region44: #{tpu_custom_call.1} parent=1 // pred_region
      %91 = dma.done [#allocation6], 1024
    $region45: #{tpu_custom_call.1} parent=1 // pred_fallthru
      _
    // Predicated region
    $region46: #{tpu_custom_call.1} parent=1 // pred_check
      _
    $region47: #{tpu_custom_call.1} parent=1 // pred_check_branch
      %93 = sbr.rel (0) target = $region49
    $region48: #{tpu_custom_call.1} parent=1 // pred_region
      %94 = dma.done [#allocation6], 4096
    $region49: #{tpu_custom_call.1} parent=1 // pred_fallthru
      _
    // Predicated region
    $region50: #{tpu_custom_call.1} parent=1 // pred_check
      _
    $region51: #{tpu_custom_call.1} parent=1 // pred_check_branch
      %96 = sbr.rel (0) target = $region53
    $region52: #{tpu_custom_call.1} parent=1 // pred_region
      %97 = dma.done [#allocation9], 1024
    $region53: #{tpu_custom_call.1} parent=1 // pred_fallthru
      _
    // Predicated region
    $region54: #{tpu_custom_call.1} parent=1 // pred_check
      _
    $region55: #{tpu_custom_call.1} parent=1 // pred_check_branch
      %99 = sbr.rel (0) target = $region57
    $region56: #{tpu_custom_call.1} parent=1 // pred_region
      %100 = dma.done [#allocation9], 1024
    $region57: #{tpu_custom_call.1} parent=1 // pred_fallthru
      _
    %v102 = vld [vmem:[#allocation2] sm:$0xf]
    %v103 = vld [vmem:[#allocation2 + $0x4] sm:$0xf]
    %v104 = vld [vmem:[#allocation5] sm:$0xff]
    %v105 = vld [vmem:[#allocation5 + $0x8] sm:$0xff]
    %v106 = vld [vmem:[#allocation5 + $0x10] sm:$0xff]
    %v107 = vld [vmem:[#allocation5 + $0x18] sm:$0xff]
    %v108 = vld [vmem:[#allocation5 + $0x20] sm:$0xff]
    %v109 = vld [vmem:[#allocation5 + $0x28] sm:$0xff]
    %v110 = vld [vmem:[#allocation5 + $0x30] sm:$0xff]
    %v111 = vld [vmem:[#allocation5 + $0x38] sm:$0xff]
    %v112 = vld [vmem:[%s2] sm:$0xf]
    %v114 = vlaneseq
    %v115 = vshrl.u32 %v114, 7
    %v116 = vsub.s32 0, %v115
    %v117 = vrot.slane %v112, %v116
    %v118 = vlaneseq
    %v119 = vshrl.u32 %v118, 7
    %v120 = vsub.s32 1, %v119
    %v121 = vrot.slane %v112, %v120
    %v122 = vlaneseq
    %v123 = vshrl.u32 %v122, 7
    %v124 = vsub.s32 2, %v123
    %v125 = vrot.slane %v112, %v124
    %v126 = vlaneseq
    %v127 = vshrl.u32 %v126, 7
    %v128 = vsub.s32 3, %v127
    %v129 = vrot.slane %v112, %v128
    %v136 = vunpack.c.l.b16 %v102
    %v137 = vunpack.c.l.b16 %v103
    %v138 = vpack.c.b16 %v137, %v136
    %v147 = vunpack.c.l.b16 %v104
    %v148 = vunpack.c.h.b16 %v104
    %v149 = vunpack.c.l.b16 %v105
    %v150 = vunpack.c.h.b16 %v105
    %v151 = vunpack.c.l.b16 %v106
    %v152 = vunpack.c.h.b16 %v106
    %v153 = vunpack.c.l.b16 %v107
    %v154 = vunpack.c.h.b16 %v107
    %v155 = vunpack.c.l.b16 %v108
    %v156 = vunpack.c.h.b16 %v108
    %v157 = vunpack.c.l.b16 %v109
    %v158 = vunpack.c.h.b16 %v109
    %v159 = vunpack.c.l.b16 %v110
    %v160 = vunpack.c.h.b16 %v110
    %v161 = vunpack.c.l.b16 %v111
    %v162 = vunpack.c.h.b16 %v111
    %v163 = vpack.c.b16 %v151, %v147
    %v164 = vpack.c.b16 %v152, %v148
    %v165 = vpack.c.b16 %v153, %v149
    %v166 = vpack.c.b16 %v154, %v150
    %v167 = vpack.c.b16 %v159, %v155
    %v168 = vpack.c.b16 %v160, %v156
    %v169 = vpack.c.b16 %v161, %v157
    %v170 = vpack.c.b16 %v162, %v158
    %vm179 = vcmask 261120
    %v181 = vsel %vm179, %v138, 0
    %183 = vmatprep.subr.bf16.mxu0 %v164
    %184 = vmatpush1.bf16.msra.mxu0 %v163
    %185 = vmatprep.subr.bf16.mxu0 %v168
    %186 = vmatpush1.bf16.msra.mxu0 %v167
    %187 = vmatprep.subr.bf16.mxu0 0
    %188 = vmatpush1.bf16.msra.mxu0 0
    %189 = vmatprep.subr.bf16.mxu0 0
    %190 = vmatpush1.bf16.msra.mxu0 0
    %191 = vmatprep.subr.bf16.mxu0 0
    %192 = vmatpush1.bf16.msra.mxu0 0
    %193 = vmatprep.subr.bf16.mxu0 0
    %194 = vmatpush1.bf16.msra.mxu0 0
    %195 = vmatprep.subr.bf16.mxu0 0
    %196 = vmatpush1.bf16.msra.mxu0 0
    %197 = vmatprep.subr.bf16.mxu0 0
    %198 = vmatpush1.bf16.msra.mxu0 0
    %199 = vmatprep.subr.bf16.mxu0 0
    %200 = vmatpush1.bf16.msra.mxu0 0
    %201 = vmatprep.subr.bf16.mxu0 0
    %202 = vmatpush1.bf16.msra.mxu0 0
    %203 = vmatprep.subr.bf16.mxu0 0
    %204 = vmatpush1.bf16.msra.mxu0 0
    %205 = vmatprep.subr.bf16.mxu0 0
    %206 = vmatpush1.bf16.msra.mxu0 0
    %207 = vmatprep.subr.bf16.mxu0 0
    %208 = vmatpush1.bf16.msra.mxu0 0
    %209 = vmatprep.subr.bf16.mxu0 0
    %210 = vmatpush1.bf16.msra.mxu0 0
    %211 = vmatprep.subr.bf16.mxu0 0
    %212 = vmatpush1.bf16.msra.mxu0 0
    %213 = vmatprep.subr.bf16.mxu0 0
    %214 = vmatpush1.bf16.msra.mxu0 0
    %215 = vmatprep.mubr.bf16.mxu0 0
    %216 = vmatmul.mubr.bf16.gmra.mrb[0].mxu0 %v181
    %v217 = vpop.f32.mrb[0].mxu0
    %v218 = vadd.f32 %v117, %v217
    %v219 = vpop.f32.mrb[0].mxu0
    %v220 = vadd.f32 %v121, %v219
    %v221 = vpop.f32.mrb[0].mxu0
    %v222 = vadd.f32 %v117, %v221
    %v223 = vpop.f32.mrb[0].mxu0
    %v224 = vadd.f32 %v121, %v223
    %225 = vdwg.mxu0
    %226 = vmatprep.subr.bf16.mxu0 %v166
    %227 = vmatpush1.bf16.msra.mxu0 %v165
    %228 = vmatprep.subr.bf16.mxu0 %v170
    %229 = vmatpush1.bf16.msra.mxu0 %v169
    %230 = vmatprep.subr.bf16.mxu0 0
    %231 = vmatpush1.bf16.msra.mxu0 0
    %232 = vmatprep.subr.bf16.mxu0 0
    %233 = vmatpush1.bf16.msra.mxu0 0
    %234 = vmatprep.subr.bf16.mxu0 0
    %235 = vmatpush1.bf16.msra.mxu0 0
    %236 = vmatprep.subr.bf16.mxu0 0
    %237 = vmatpush1.bf16.msra.mxu0 0
    %238 = vmatprep.subr.bf16.mxu0 0
    %239 = vmatpush1.bf16.msra.mxu0 0
    %240 = vmatprep.subr.bf16.mxu0 0
    %241 = vmatpush1.bf16.msra.mxu0 0
    %242 = vmatprep.subr.bf16.mxu0 0
    %243 = vmatpush1.bf16.msra.mxu0 0
    %244 = vmatprep.subr.bf16.mxu0 0
    %245 = vmatpush1.bf16.msra.mxu0 0
    %246 = vmatprep.subr.bf16.mxu0 0
    %247 = vmatpush1.bf16.msra.mxu0 0
    %248 = vmatprep.subr.bf16.mxu0 0
    %249 = vmatpush1.bf16.msra.mxu0 0
    %250 = vmatprep.subr.bf16.mxu0 0
    %251 = vmatpush1.bf16.msra.mxu0 0
    %252 = vmatprep.subr.bf16.mxu0 0
    %253 = vmatpush1.bf16.msra.mxu0 0
    %254 = vmatprep.subr.bf16.mxu0 0
    %255 = vmatpush1.bf16.msra.mxu0 0
    %256 = vmatprep.subr.bf16.mxu0 0
    %257 = vmatpush1.bf16.msra.mxu0 0
    %258 = vmatprep.mubr.bf16.mxu0 0
    %259 = vmatmul.mubr.bf16.gmra.mrb[0].mxu0 %v181
    %v260 = vpop.f32.mrb[0].mxu0
    %v261 = vadd.f32 %v125, %v260
    %v262 = vpop.f32.mrb[0].mxu0
    %v263 = vadd.f32 %v129, %v262
    %v264 = vpop.f32.mrb[0].mxu0
    %v265 = vadd.f32 %v125, %v264
    %v266 = vpop.f32.mrb[0].mxu0
    %v267 = vadd.f32 %v129, %v266
    %268 = vdwg.mxu0
    %v269 = vmax.f32 %v218, 0.0
    %v270 = vmax.f32 %v220, 0.0
    %v271 = vmax.f32 %v261, 0.0
    %v272 = vmax.f32 %v263, 0.0
    %v273 = vmax.f32 %v222, 0.0
    %v274 = vmax.f32 %v224, 0.0
    %v275 = vmax.f32 %v265, 0.0
    %v276 = vmax.f32 %v267, 0.0
    %v277 = vpack.c.bf16 %v273, %v269
    %v278 = vpack.c.bf16 %v274, %v270
    %v279 = vpack.c.bf16 %v275, %v271
    %v280 = vpack.c.bf16 %v276, %v272
    %v281 = vld [vmem:[#allocation7] sm:$0xf]
    %v282 = vld [vmem:[#allocation7 + $0x4] sm:$0xf]
    %v283 = vld [vmem:[#allocation7 + $0x8] sm:$0xf]
    %v284 = vld [vmem:[#allocation7 + $0xc] sm:$0xf]
    %v285 = vld [vmem:[#allocation7 + $0x10] sm:$0xf]
    %v286 = vld [vmem:[#allocation7 + $0x14] sm:$0xf]
    %v287 = vld [vmem:[#allocation7 + $0x18] sm:$0xf]
    %v288 = vld [vmem:[#allocation7 + $0x1c] sm:$0xf]
    %v289 = vld [vmem:[#allocation7 + $0x20] sm:$0xf]
    %v290 = vld [vmem:[#allocation7 + $0x24] sm:$0xf]
    %v291 = vld [vmem:[#allocation7 + $0x28] sm:$0xf]
    %v292 = vld [vmem:[#allocation7 + $0x2c] sm:$0xf]
    %v293 = vld [vmem:[#allocation7 + $0x30] sm:$0xf]
    %v294 = vld [vmem:[#allocation7 + $0x34] sm:$0xf]
    %v295 = vld [vmem:[#allocation7 + $0x38] sm:$0xf]
    %v296 = vld [vmem:[#allocation7 + $0x3c] sm:$0xf]
    %v297 = vld [vmem:[#allocation7 + $0x40] sm:$0xf]
    %v298 = vld [vmem:[#allocation7 + $0x44] sm:$0xf]
    %v299 = vld [vmem:[#allocation7 + $0x48] sm:$0xf]
    %v300 = vld [vmem:[#allocation7 + $0x4c] sm:$0xf]
    %v301 = vld [vmem:[#allocation7 + $0x50] sm:$0xf]
    %v302 = vld [vmem:[#allocation7 + $0x54] sm:$0xf]
    %v303 = vld [vmem:[#allocation7 + $0x58] sm:$0xf]
    %v304 = vld [vmem:[#allocation7 + $0x5c] sm:$0xf]
    %v305 = vld [vmem:[#allocation7 + $0x60] sm:$0xf]
    %v306 = vld [vmem:[#allocation7 + $0x64] sm:$0xf]
    %v307 = vld [vmem:[#allocation7 + $0x68] sm:$0xf]
    %v308 = vld [vmem:[#allocation7 + $0x6c] sm:$0xf]
    %v309 = vld [vmem:[#allocation7 + $0x70] sm:$0xf]
    %v310 = vld [vmem:[#allocation7 + $0x74] sm:$0xf]
    %v311 = vld [vmem:[#allocation7 + $0x78] sm:$0xf]
    %v312 = vld [vmem:[#allocation7 + $0x7c] sm:$0xf]
    %v313 = vld [vmem:[#allocation7 + $0x80] sm:$0xf]
    %v314 = vld [vmem:[#allocation7 + $0x84] sm:$0xf]
    %v315 = vld [vmem:[#allocation7 + $0x88] sm:$0xf]
    %v316 = vld [vmem:[#allocation7 + $0x8c] sm:$0xf]
    %v317 = vld [vmem:[#allocation7 + $0x90] sm:$0xf]
    %v318 = vld [vmem:[#allocation7 + $0x94] sm:$0xf]
    %v319 = vld [vmem:[#allocation7 + $0x98] sm:$0xf]
    %v320 = vld [vmem:[#allocation7 + $0x9c] sm:$0xf]
    %v321 = vld [vmem:[#allocation7 + $0xa0] sm:$0xf]
    %v322 = vld [vmem:[#allocation7 + $0xa4] sm:$0xf]
    %v323 = vld [vmem:[#allocation7 + $0xa8] sm:$0xf]
    %v324 = vld [vmem:[#allocation7 + $0xac] sm:$0xf]
    %v325 = vld [vmem:[#allocation7 + $0xb0] sm:$0xf]
    %v326 = vld [vmem:[#allocation7 + $0xb4] sm:$0xf]
    %v327 = vld [vmem:[#allocation7 + $0xb8] sm:$0xf]
    %v328 = vld [vmem:[#allocation7 + $0xbc] sm:$0xf]
    %v329 = vld [vmem:[#allocation7 + $0xc0] sm:$0xf]
    %v330 = vld [vmem:[#allocation7 + $0xc4] sm:$0xf]
    %v331 = vld [vmem:[#allocation7 + $0xc8] sm:$0xf]
    %v332 = vld [vmem:[#allocation7 + $0xcc] sm:$0xf]
    %v333 = vld [vmem:[#allocation7 + $0xd0] sm:$0xf]
    %v334 = vld [vmem:[#allocation7 + $0xd4] sm:$0xf]
    %v335 = vld [vmem:[#allocation7 + $0xd8] sm:$0xf]
    %v336 = vld [vmem:[#allocation7 + $0xdc] sm:$0xf]
    %v337 = vld [vmem:[#allocation7 + $0xe0] sm:$0xf]
    %v338 = vld [vmem:[#allocation7 + $0xe4] sm:$0xf]
    %v339 = vld [vmem:[#allocation7 + $0xe8] sm:$0xf]
    %v340 = vld [vmem:[#allocation7 + $0xec] sm:$0xf]
    %v341 = vld [vmem:[#allocation7 + $0xf0] sm:$0xf]
    %v342 = vld [vmem:[#allocation7 + $0xf4] sm:$0xf]
    %v343 = vld [vmem:[#allocation7 + $0xf8] sm:$0xf]
    %v344 = vld [vmem:[#allocation7 + $0xfc] sm:$0xf]
    %v345 = vld [vmem:[%s4] sm:$0x1]
    %v347 = vlaneseq
    %v348 = vshrl.u32 %v347, 7
    %v349 = vsub.s32 0, %v348
    %v350 = vrot.slane %v345, %v349
    %v416 = vunpack.c.l.b16 %v281
    %v417 = vunpack.c.l.b16 %v282
    %v418 = vunpack.c.l.b16 %v283
    %v419 = vunpack.c.l.b16 %v284
    %v420 = vunpack.c.l.b16 %v285
    %v421 = vunpack.c.l.b16 %v286
    %v422 = vunpack.c.l.b16 %v287
    %v423 = vunpack.c.l.b16 %v288
    %v424 = vunpack.c.l.b16 %v289
    %v425 = vunpack.c.l.b16 %v290
    %v426 = vunpack.c.l.b16 %v291
    %v427 = vunpack.c.l.b16 %v292
    %v428 = vunpack.c.l.b16 %v293
    %v429 = vunpack.c.l.b16 %v294
    %v430 = vunpack.c.l.b16 %v295
    %v431 = vunpack.c.l.b16 %v296
    %v432 = vunpack.c.l.b16 %v297
    %v433 = vunpack.c.l.b16 %v298
    %v434 = vunpack.c.l.b16 %v299
    %v435 = vunpack.c.l.b16 %v300
    %v436 = vunpack.c.l.b16 %v301
    %v437 = vunpack.c.l.b16 %v302
    %v438 = vunpack.c.l.b16 %v303
    %v439 = vunpack.c.l.b16 %v304
    %v440 = vunpack.c.l.b16 %v305
    %v441 = vunpack.c.l.b16 %v306
    %v442 = vunpack.c.l.b16 %v307
    %v443 = vunpack.c.l.b16 %v308
    %v444 = vunpack.c.l.b16 %v309
    %v445 = vunpack.c.l.b16 %v310
    %v446 = vunpack.c.l.b16 %v311
    %v447 = vunpack.c.l.b16 %v312
    %v448 = vunpack.c.l.b16 %v313
    %v449 = vunpack.c.l.b16 %v314
    %v450 = vunpack.c.l.b16 %v315
    %v451 = vunpack.c.l.b16 %v316
    %v452 = vunpack.c.l.b16 %v317
    %v453 = vunpack.c.l.b16 %v318
    %v454 = vunpack.c.l.b16 %v319
    %v455 = vunpack.c.l.b16 %v320
    %v456 = vunpack.c.l.b16 %v321
    %v457 = vunpack.c.l.b16 %v322
    %v458 = vunpack.c.l.b16 %v323
    %v459 = vunpack.c.l.b16 %v324
    %v460 = vunpack.c.l.b16 %v325
    %v461 = vunpack.c.l.b16 %v326
    %v462 = vunpack.c.l.b16 %v327
    %v463 = vunpack.c.l.b16 %v328
    %v464 = vunpack.c.l.b16 %v329
    %v465 = vunpack.c.l.b16 %v330
    %v466 = vunpack.c.l.b16 %v331
    %v467 = vunpack.c.l.b16 %v332
    %v468 = vunpack.c.l.b16 %v333
    %v469 = vunpack.c.l.b16 %v334
    %v470 = vunpack.c.l.b16 %v335
    %v471 = vunpack.c.l.b16 %v336
    %v472 = vunpack.c.l.b16 %v337
    %v473 = vunpack.c.l.b16 %v338
    %v474 = vunpack.c.l.b16 %v339
    %v475 = vunpack.c.l.b16 %v340
    %v476 = vunpack.c.l.b16 %v341
    %v477 = vunpack.c.l.b16 %v342
    %v478 = vunpack.c.l.b16 %v343
    %v479 = vunpack.c.l.b16 %v344
    %v480 = vpack.c.b16 %v417, %v416
    %v481 = vpack.c.b16 %v419, %v418
    %v482 = vpack.c.b16 %v421, %v420
    %v483 = vpack.c.b16 %v423, %v422
    %v484 = vpack.c.b16 %v425, %v424
    %v485 = vpack.c.b16 %v427, %v426
    %v486 = vpack.c.b16 %v429, %v428
    %v487 = vpack.c.b16 %v431, %v430
    %v488 = vpack.c.b16 %v433, %v432
    %v489 = vpack.c.b16 %v435, %v434
    %v490 = vpack.c.b16 %v437, %v436
    %v491 = vpack.c.b16 %v439, %v438
    %v492 = vpack.c.b16 %v441, %v440
    %v493 = vpack.c.b16 %v443, %v442
    %v494 = vpack.c.b16 %v445, %v444
    %v495 = vpack.c.b16 %v447, %v446
    %v496 = vpack.c.b16 %v449, %v448
    %v497 = vpack.c.b16 %v451, %v450
    %v498 = vpack.c.b16 %v453, %v452
    %v499 = vpack.c.b16 %v455, %v454
    %v500 = vpack.c.b16 %v457, %v456
    %v501 = vpack.c.b16 %v459, %v458
    %v502 = vpack.c.b16 %v461, %v460
    %v503 = vpack.c.b16 %v463, %v462
    %v504 = vpack.c.b16 %v465, %v464
    %v505 = vpack.c.b16 %v467, %v466
    %v506 = vpack.c.b16 %v469, %v468
    %v507 = vpack.c.b16 %v471, %v470
    %v508 = vpack.c.b16 %v473, %v472
    %v509 = vpack.c.b16 %v475, %v474
    %v510 = vpack.c.b16 %v477, %v476
    %v511 = vpack.c.b16 %v479, %v478
    %544 = vmatprep.subr.bf16.mxu0 0
    %545 = vmatpush1.bf16.msra.mxu0 %v480
    %546 = vmatprep.subr.bf16.mxu0 0
    %547 = vmatpush1.bf16.msra.mxu0 %v481
    %548 = vmatprep.subr.bf16.mxu0 0
    %549 = vmatpush1.bf16.msra.mxu0 %v482
    %550 = vmatprep.subr.bf16.mxu0 0
    %551 = vmatpush1.bf16.msra.mxu0 %v483
    %552 = vmatprep.subr.bf16.mxu0 0
    %553 = vmatpush1.bf16.msra.mxu0 %v484
    %554 = vmatprep.subr.bf16.mxu0 0
    %555 = vmatpush1.bf16.msra.mxu0 %v485
    %556 = vmatprep.subr.bf16.mxu0 0
    %557 = vmatpush1.bf16.msra.mxu0 %v486
    %558 = vmatprep.subr.bf16.mxu0 0
    %559 = vmatpush1.bf16.msra.mxu0 %v487
    %560 = vmatprep.subr.bf16.mxu0 0
    %561 = vmatpush1.bf16.msra.mxu0 %v488
    %562 = vmatprep.subr.bf16.mxu0 0
    %563 = vmatpush1.bf16.msra.mxu0 %v489
    %564 = vmatprep.subr.bf16.mxu0 0
    %565 = vmatpush1.bf16.msra.mxu0 %v490
    %566 = vmatprep.subr.bf16.mxu0 0
    %567 = vmatpush1.bf16.msra.mxu0 %v491
    %568 = vmatprep.subr.bf16.mxu0 0
    %569 = vmatpush1.bf16.msra.mxu0 %v492
    %570 = vmatprep.subr.bf16.mxu0 0
    %571 = vmatpush1.bf16.msra.mxu0 %v493
    %572 = vmatprep.subr.bf16.mxu0 0
    %573 = vmatpush1.bf16.msra.mxu0 %v494
    %574 = vmatprep.subr.bf16.mxu0 0
    %575 = vmatpush1.bf16.msra.mxu0 %v495
    %576 = vmatprep.mubr.bf16.mxu0 %v278
    %577 = vmatmul.mubr.bf16.gmra.mrb[0].mxu0 %v277
    %v578 = vpop.f32.mrb[0].mxu0
    %v579 = vadd.f32 %v350, %v578
    %v580 = vpop.f32.mrb[0].mxu0
    %v581 = vpop.f32.mrb[0].mxu0
    %v582 = vadd.f32 %v350, %v581
    %v583 = vpop.f32.mrb[0].mxu0
    %584 = vdwg.mxu0
    %585 = vmatprep.subr.bf16.mxu0 0
    %586 = vmatpush1.bf16.msra.mxu0 %v496
    %587 = vmatprep.subr.bf16.mxu0 0
    %588 = vmatpush1.bf16.msra.mxu0 %v497
    %589 = vmatprep.subr.bf16.mxu0 0
    %590 = vmatpush1.bf16.msra.mxu0 %v498
    %591 = vmatprep.subr.bf16.mxu0 0
    %592 = vmatpush1.bf16.msra.mxu0 %v499
    %593 = vmatprep.subr.bf16.mxu0 0
    %594 = vmatpush1.bf16.msra.mxu0 %v500
    %595 = vmatprep.subr.bf16.mxu0 0
    %596 = vmatpush1.bf16.msra.mxu0 %v501
    %597 = vmatprep.subr.bf16.mxu0 0
    %598 = vmatpush1.bf16.msra.mxu0 %v502
    %599 = vmatprep.subr.bf16.mxu0 0
    %600 = vmatpush1.bf16.msra.mxu0 %v503
    %601 = vmatprep.subr.bf16.mxu0 0
    %602 = vmatpush1.bf16.msra.mxu0 %v504
    %603 = vmatprep.subr.bf16.mxu0 0
    %604 = vmatpush1.bf16.msra.mxu0 %v505
    %605 = vmatprep.subr.bf16.mxu0 0
    %606 = vmatpush1.bf16.msra.mxu0 %v506
    %607 = vmatprep.subr.bf16.mxu0 0
    %608 = vmatpush1.bf16.msra.mxu0 %v507
    %609 = vmatprep.subr.bf16.mxu0 0
    %610 = vmatpush1.bf16.msra.mxu0 %v508
    %611 = vmatprep.subr.bf16.mxu0 0
    %612 = vmatpush1.bf16.msra.mxu0 %v509
    %613 = vmatprep.subr.bf16.mxu0 0
    %614 = vmatpush1.bf16.msra.mxu0 %v510
    %615 = vmatprep.subr.bf16.mxu0 0
    %616 = vmatpush1.bf16.msra.mxu0 %v511
    %617 = vmatprep.mubr.bf16.mxu0 %v280
    %618 = vmatmul.mubr.bf16.gmra.mrb[0].mxu0 %v279
    %v619 = vpop.f32.mrb[0].mxu0
    %v620 = vadd.f32 %v579, %v619
    %v621 = vpop.f32.mrb[0].mxu0
    %v622 = vpop.f32.mrb[0].mxu0
    %v623 = vadd.f32 %v582, %v622
    %v624 = vpop.f32.mrb[0].mxu0
    %625 = vdwg.mxu0
    %v626 = vmax.f32 %v620, 0.0
    %v627 = vmax.f32 %v623, 0.0
    %v628 = vpack.c.bf16 %v627, %v626
    %v629 = vld [vmem:[#allocation8] sm:$0xf]
    %v630 = vld [vmem:[#allocation8 + $0x4] sm:$0xf]
    %v631 = vld [vmem:[#allocation8 + $0x8] sm:$0xf]
    %v632 = vld [vmem:[#allocation8 + $0xc] sm:$0xf]
    %v633 = vld [vmem:[#allocation8 + $0x10] sm:$0xf]
    %v634 = vld [vmem:[#allocation8 + $0x14] sm:$0xf]
    %v635 = vld [vmem:[#allocation8 + $0x18] sm:$0xf]
    %v636 = vld [vmem:[#allocation8 + $0x1c] sm:$0xf]
    %v637 = vld [vmem:[#allocation8 + $0x20] sm:$0xf]
    %v638 = vld [vmem:[#allocation8 + $0x24] sm:$0xf]
    %v639 = vld [vmem:[#allocation8 + $0x28] sm:$0xf]
    %v640 = vld [vmem:[#allocation8 + $0x2c] sm:$0xf]
    %v641 = vld [vmem:[#allocation8 + $0x30] sm:$0xf]
    %v642 = vld [vmem:[#allocation8 + $0x34] sm:$0xf]
    %v643 = vld [vmem:[#allocation8 + $0x38] sm:$0xf]
    %v644 = vld [vmem:[#allocation8 + $0x3c] sm:$0xf]
    %v645 = vld [vmem:[%s6] sm:$0x1]
    %v647 = vlaneseq
    %v648 = vshrl.u32 %v647, 7
    %v649 = vsub.s32 0, %v648
    %v650 = vrot.slane %v645, %v649
    %v668 = vunpack.c.l.b16 %v629
    %v669 = vunpack.c.l.b16 %v630
    %v670 = vunpack.c.l.b16 %v631
    %v671 = vunpack.c.l.b16 %v632
    %v672 = vunpack.c.l.b16 %v633
    %v673 = vunpack.c.l.b16 %v634
    %v674 = vunpack.c.l.b16 %v635
    %v675 = vunpack.c.l.b16 %v636
    %v676 = vunpack.c.l.b16 %v637
    %v677 = vunpack.c.l.b16 %v638
    %v678 = vunpack.c.l.b16 %v639
    %v679 = vunpack.c.l.b16 %v640
    %v680 = vunpack.c.l.b16 %v641
    %v681 = vunpack.c.l.b16 %v642
    %v682 = vunpack.c.l.b16 %v643
    %v683 = vunpack.c.l.b16 %v644
    %v684 = vpack.c.b16 %v669, %v668
    %v685 = vpack.c.b16 %v671, %v670
    %v686 = vpack.c.b16 %v673, %v672
    %v687 = vpack.c.b16 %v675, %v674
    %v688 = vpack.c.b16 %v677, %v676
    %v689 = vpack.c.b16 %v679, %v678
    %v690 = vpack.c.b16 %v681, %v680
    %v691 = vpack.c.b16 %v683, %v682
    %700 = vmatprep.subr.bf16.mxu0 0
    %701 = vmatpush1.bf16.msra.mxu0 %v684
    %702 = vmatprep.subr.bf16.mxu0 0
    %703 = vmatpush1.bf16.msra.mxu0 %v685
    %704 = vmatprep.subr.bf16.mxu0 0
    %705 = vmatpush1.bf16.msra.mxu0 %v686
    %706 = vmatprep.subr.bf16.mxu0 0
    %707 = vmatpush1.bf16.msra.mxu0 %v687
    %708 = vmatprep.subr.bf16.mxu0 0
    %709 = vmatpush1.bf16.msra.mxu0 %v688
    %710 = vmatprep.subr.bf16.mxu0 0
    %711 = vmatpush1.bf16.msra.mxu0 %v689
    %712 = vmatprep.subr.bf16.mxu0 0
    %713 = vmatpush1.bf16.msra.mxu0 %v690
    %714 = vmatprep.subr.bf16.mxu0 0
    %715 = vmatpush1.bf16.msra.mxu0 %v691
    %716 = vmatprep.subr.bf16.mxu0 0
    %717 = vmatpush1.bf16.msra.mxu0 0
    %718 = vmatprep.subr.bf16.mxu0 0
    %719 = vmatpush1.bf16.msra.mxu0 0
    %720 = vmatprep.subr.bf16.mxu0 0
    %721 = vmatpush1.bf16.msra.mxu0 0
    %722 = vmatprep.subr.bf16.mxu0 0
    %723 = vmatpush1.bf16.msra.mxu0 0
    %724 = vmatprep.subr.bf16.mxu0 0
    %725 = vmatpush1.bf16.msra.mxu0 0
    %726 = vmatprep.subr.bf16.mxu0 0
    %727 = vmatpush1.bf16.msra.mxu0 0
    %728 = vmatprep.subr.bf16.mxu0 0
    %729 = vmatpush1.bf16.msra.mxu0 0
    %730 = vmatprep.subr.bf16.mxu0 0
    %731 = vmatpush1.bf16.msra.mxu0 0
    %732 = vmatprep.mubr.bf16.mxu0 0
    %733 = vmatmul.mubr.bf16.gmra.mrb[0].mxu0 %v628
    %v734 = vpop.f32.mrb[0].mxu0
    %v735 = vadd.f32 %v650, %v734
    %v736 = vpop.f32.mrb[0].mxu0
    %v737 = vpop.f32.mrb[0].mxu0
    %v738 = vadd.f32 %v650, %v737
    %v739 = vpop.f32.mrb[0].mxu0
    %740 = vdwg.mxu0
    %v741 = vmax.f32 %v735, 0.0
    %v742 = vmax.f32 %v738, 0.0
    %v743 = vpack.c.bf16 %v742, %v741
    %v744 = vld [vmem:[#allocation10] sm:$0xf]
    %v745 = vld [vmem:[#allocation10 + $0x4] sm:$0xf]
    %v746 = vld [vmem:[#allocation10 + $0x8] sm:$0xf]
    %v747 = vld [vmem:[#allocation10 + $0xc] sm:$0xf]
    %v748 = vld [vmem:[#allocation10 + $0x10] sm:$0xf]
    %v749 = vld [vmem:[#allocation10 + $0x14] sm:$0xf]
    %v750 = vld [vmem:[#allocation10 + $0x18] sm:$0xf]
    %v751 = vld [vmem:[#allocation10 + $0x1c] sm:$0xf]
    %v752 = vld [vmem:[#allocation10 + $0x20] sm:$0xf]
    %v753 = vld [vmem:[#allocation10 + $0x24] sm:$0xf]
    %v754 = vld [vmem:[#allocation10 + $0x28] sm:$0xf]
    %v755 = vld [vmem:[#allocation10 + $0x2c] sm:$0xf]
    %v756 = vld [vmem:[#allocation10 + $0x30] sm:$0xf]
    %v757 = vld [vmem:[#allocation10 + $0x34] sm:$0xf]
    %v758 = vld [vmem:[#allocation10 + $0x38] sm:$0xf]
    %v759 = vld [vmem:[#allocation10 + $0x3c] sm:$0xf]
    %v760 = vld [vmem:[%s8] sm:$0x1]
    %v762 = vlaneseq
    %v763 = vshrl.u32 %v762, 7
    %v764 = vsub.s32 0, %v763
    %v765 = vrot.slane %v760, %v764
    %v783 = vunpack.c.l.b16 %v744
    %v784 = vunpack.c.l.b16 %v745
    %v785 = vunpack.c.l.b16 %v746
    %v786 = vunpack.c.l.b16 %v747
    %v787 = vunpack.c.l.b16 %v748
    %v788 = vunpack.c.l.b16 %v749
    %v789 = vunpack.c.l.b16 %v750
    %v790 = vunpack.c.l.b16 %v751
    %v791 = vunpack.c.l.b16 %v752
    %v792 = vunpack.c.l.b16 %v753
    %v793 = vunpack.c.l.b16 %v754
    %v794 = vunpack.c.l.b16 %v755
    %v795 = vunpack.c.l.b16 %v756
    %v796 = vunpack.c.l.b16 %v757
    %v797 = vunpack.c.l.b16 %v758
    %v798 = vunpack.c.l.b16 %v759
    %v799 = vpack.c.b16 %v784, %v783
    %v800 = vpack.c.b16 %v786, %v785
    %v801 = vpack.c.b16 %v788, %v787
    %v802 = vpack.c.b16 %v790, %v789
    %v803 = vpack.c.b16 %v792, %v791
    %v804 = vpack.c.b16 %v794, %v793
    %v805 = vpack.c.b16 %v796, %v795
    %v806 = vpack.c.b16 %v798, %v797
    %815 = vmatprep.subr.bf16.mxu0 0
    %816 = vmatpush1.bf16.msra.mxu0 %v799
    %817 = vmatprep.subr.bf16.mxu0 0
    %818 = vmatpush1.bf16.msra.mxu0 %v800
    %819 = vmatprep.subr.bf16.mxu0 0
    %820 = vmatpush1.bf16.msra.mxu0 %v801
    %821 = vmatprep.subr.bf16.mxu0 0
    %822 = vmatpush1.bf16.msra.mxu0 %v802
    %823 = vmatprep.subr.bf16.mxu0 0
    %824 = vmatpush1.bf16.msra.mxu0 %v803
    %825 = vmatprep.subr.bf16.mxu0 0
    %826 = vmatpush1.bf16.msra.mxu0 %v804
    %827 = vmatprep.subr.bf16.mxu0 0
    %828 = vmatpush1.bf16.msra.mxu0 %v805
    %829 = vmatprep.subr.bf16.mxu0 0
    %830 = vmatpush1.bf16.msra.mxu0 %v806
    %831 = vmatprep.subr.bf16.mxu0 0
    %832 = vmatpush1.bf16.msra.mxu0 0
    %833 = vmatprep.subr.bf16.mxu0 0
    %834 = vmatpush1.bf16.msra.mxu0 0
    %835 = vmatprep.subr.bf16.mxu0 0
    %836 = vmatpush1.bf16.msra.mxu0 0
    %837 = vmatprep.subr.bf16.mxu0 0
    %838 = vmatpush1.bf16.msra.mxu0 0
    %839 = vmatprep.subr.bf16.mxu0 0
    %840 = vmatpush1.bf16.msra.mxu0 0
    %841 = vmatprep.subr.bf16.mxu0 0
    %842 = vmatpush1.bf16.msra.mxu0 0
    %843 = vmatprep.subr.bf16.mxu0 0
    %844 = vmatpush1.bf16.msra.mxu0 0
    %845 = vmatprep.subr.bf16.mxu0 0
    %846 = vmatpush1.bf16.msra.mxu0 0
    %847 = vmatprep.mubr.bf16.mxu0 0
    %848 = vmatmul.mubr.bf16.gmra.mrb[0].mxu0 %v743
    %v849 = vpop.f32.mrb[0].mxu0
    %v850 = vadd.f32 %v765, %v849
    %v851 = vpop.f32.mrb[0].mxu0
    %v852 = vpop.f32.mrb[0].mxu0
    %v853 = vadd.f32 %v765, %v852
    %v854 = vpop.f32.mrb[0].mxu0
    %855 = vdwg.mxu0
    %856 = vst [vmem:[#allocation11] sm:$0xff] %v850
    %857 = vst [vmem:[#allocation11 + $0x8] sm:$0xff] %v853
    // Predicated region
    $region58: #{tpu_custom_call.1} parent=1 // pred_check
      _
    $region59: #{tpu_custom_call.1} parent=1 // pred_check_branch
      %859 = sbr.rel (0) target = $region61
    $region60: #{tpu_custom_call.1} parent=1 // pred_region
      %s861 = ssub.s32 256, 256
      %862 = vsyncadd [#allocation4], %s861
      %s863 = sshll.u32 [#allocation11], 4
      %s864 = int_to_ptr.vmem [resolvable:$true] %s863
      %869 = dma.vmem_to_hbm [thread:$0]  %s864, 256, %s9, [#allocation4], 128, 128, 8
    $region61: #{tpu_custom_call.1} parent=1 // pred_fallthru
      _
    // Predicated region
    $region62: #{tpu_custom_call.1} parent=1 // pred_check
      _
    $region63: #{tpu_custom_call.1} parent=1 // pred_check_branch
      %871 = sbr.rel (0) target = $region65
    $region64: #{tpu_custom_call.1} parent=1 // pred_region
      %872 = dma.done [#allocation4], 256
    $region65: #{tpu_custom_call.1} parent=1 // pred_fallthru
      _
    %873 = vsyncpa [#allocation3], 1
    %874 = vsyncpa [#allocation6], 1
    %875 = vsyncpa [#allocation9], 1
    %876 = vsyncpa [#allocation4], 1

</llo_original>
